<compile_context>
chip_gen: v6e
topology: v6e:2x2x1
jax: 0.10.0
libtpu: 0.0.40
codegen_flags: <defaults>
</compile_context>

<pallas_src>
import functools

import jax
import jax.numpy as jnp
from jax.experimental import pallas as pl
from jax.experimental.pallas import tpu as pltpu


def _round_up(x, m):
    return (x + m - 1) // m * m


@functools.lru_cache(maxsize=None)
def _vmem_limit():
    """Generation-aware scoped VMEM budget: ~48 MiB on v7x (64 MiB physical),
    ~96 MiB on v5e/v6e (128 MiB physical)."""
    try:
        cap = int(pltpu.get_tpu_info().vmem_capacity_bytes)
    except Exception:
        cap = 64 * 1024 * 1024
    return int(min(cap * 3 // 4, 96 * 1024 * 1024))


# ----------------------------------------------------------------------------
# Tiled, pipelined MXU matmul: C = A @ B, f32 VMEM accumulator, configurable
# compute dtype (cast happens IN kernel -> no extra XLA cast pass) and output
# dtype (bf16 for intermediates).  Tiny N (< 128) is kept unpadded so stores
# never write 32x junk lanes.
# ----------------------------------------------------------------------------
def _matmul_kernel(a_ref, b_ref, o_ref, acc_ref, *, compute_dtype):
    @pl.when(pl.program_id(2) == 0)
    def _():
        acc_ref[...] = jnp.zeros_like(acc_ref)

    acc_ref[...] += jnp.dot(a_ref[...].astype(compute_dtype),
                            b_ref[...].astype(compute_dtype),
                            preferred_element_type=jnp.float32)

    @pl.when(pl.program_id(2) == pl.num_programs(2) - 1)
    def _():
        o_ref[...] = acc_ref[...].astype(o_ref.dtype)


def pallas_matmul(a, b, *, out_dtype=jnp.float32, cast_bf16=True,
                  tm=512, tn=512, tk=512):
    M, K = a.shape
    K2, N = b.shape
    assert K == K2
    compute_dtype = jnp.bfloat16 if cast_bf16 else jnp.float32

    tm = min(tm, _round_up(M, 16))
    tk = min(tk, _round_up(K, 128))
    if N < 128:
        tn = N                       # out block last dim == full dim: legal, no pad waste
    else:
        tn = min(tn, _round_up(N, 128))
    Mp, Kp, Np = _round_up(M, tm), _round_up(K, tk), _round_up(N, tn)
    if (Mp, Kp) != (M, K):
        a = jnp.pad(a, ((0, Mp - M), (0, Kp - K)))
    if (Kp, Np) != (K, N):
        b = jnp.pad(b, ((0, Kp - K), (0, Np - N)))

    grid = (Mp // tm, Np // tn, Kp // tk)
    a_bytes = int(a.dtype.itemsize)
    b_bytes = int(b.dtype.itemsize)
    o_bytes = int(jnp.dtype(out_dtype).itemsize)
    cost = pl.CostEstimate(
        flops=int(2 * Mp * Np * Kp),
        transcendentals=0,
        bytes_accessed=int(Mp * Kp * a_bytes + Kp * Np * b_bytes + Mp * Np * o_bytes))

    out = pl.pallas_call(
        functools.partial(_matmul_kernel, compute_dtype=compute_dtype),
        out_shape=jax.ShapeDtypeStruct((Mp, Np), out_dtype),
        grid_spec=pltpu.PrefetchScalarGridSpec(
            num_scalar_prefetch=0,
            grid=grid,
            in_specs=[pl.BlockSpec((tm, tk), lambda i, j, k: (i, k)),
                      pl.BlockSpec((tk, tn), lambda i, j, k: (k, j))],
            out_specs=pl.BlockSpec((tm, tn), lambda i, j, k: (i, j)),
            scratch_shapes=[pltpu.VMEM((tm, tn), jnp.float32)]),
        compiler_params=pltpu.CompilerParams(
            dimension_semantics=("parallel", "parallel", "arbitrary"),
            vmem_limit_bytes=_vmem_limit()),
        cost_estimate=cost,
    )(a, b)
    if (Mp, Np) != (M, N):
        out = out[:M, :N]
    return out


# ----------------------------------------------------------------------------
# Prototypes: masked average pooling per support + per-class mean, grid over S
# (one support image per step, f32 VMEM accumulator).  Only (hw, C) resident
# per step -> fits VMEM even for feat_dim=2048 backbones on v7x.
# ----------------------------------------------------------------------------
def _proto_kernel(m_ref, wc_ref, f_ref, o_ref, acc_ref):
    s = pl.program_id(0)

    @pl.when(s == 0)
    def _():
        acc_ref[...] = jnp.zeros_like(acc_ref)

    m = m_ref[0]                                   # (hw, 1) f32 mask
    f = f_ref[0].astype(jnp.float32)               # (hw, C)
    num = jnp.sum(f * m, axis=0, keepdims=True)    # (1, C)  masked sum
    area = jnp.sum(m, axis=0, keepdims=True)       # (1, 1)
    per = num / (area + 1e-7)                      # per-support masked average
    # weighted scatter into class prototypes (per-class shot mean)
    acc_ref[...] += wc_ref[0] * per                # (Np,1)*(1,C) -> (Np,C)

    @pl.when(s == pl.num_programs(0) - 1)
    def _():
        o_ref[...] = acc_ref[...]


def compute_prototypes(s_feat, masks, labels, classes):
    """s_feat: (S, h, w, C) channels-last support features; masks: (S, H, W)."""
    S, h, w, C = s_feat.shape
    Hm, Wm = masks.shape[1], masks.shape[2]
    sh, sw = Hm // h, Wm // w
    hw = h * w
    # nearest-neighbour downsample (matches F.interpolate nearest for integer ratios)
    m = (masks == 255).astype(jnp.float32)[:, ::sh, ::sw].reshape(S, hw, 1)

    n_way = len(classes)
    Np = _round_up(n_way, 8)
    cls_arr = jnp.asarray(classes, jnp.int32)
    sel = (labels[None, :] == cls_arr[:, None]).astype(jnp.float32)   # (n_way, S)
    wcls = sel / jnp.maximum(sel.sum(axis=1, keepdims=True), 1.0)
    wcls = jnp.pad(wcls, ((0, Np - n_way), (0, 0)))                   # (Np, S)
    wcls = wcls.T.reshape(S, Np, 1)                                   # per-support column

    f = s_feat.reshape(S, hw, C)
    f_bytes = int(f.dtype.itemsize)
    protos = pl.pallas_call(
        _proto_kernel,
        out_shape=jax.ShapeDtypeStruct((Np, C), jnp.float32),
        grid=(S,),
        in_specs=[pl.BlockSpec((1, hw, 1), lambda s: (s, 0, 0)),
                  pl.BlockSpec((1, Np, 1), lambda s: (s, 0, 0)),
                  pl.BlockSpec((1, hw, C), lambda s: (s, 0, 0))],
        out_specs=pl.BlockSpec((Np, C), lambda s: (0, 0)),
        scratch_shapes=[pltpu.VMEM((Np, C), jnp.float32)],
        compiler_params=pltpu.CompilerParams(
            dimension_semantics=("arbitrary",),
            vmem_limit_bytes=_vmem_limit()),
        cost_estimate=pl.CostEstimate(
            flops=int(3 * S * hw * C + 2 * S * Np * C),
            transcendentals=0,
            bytes_accessed=int(S * hw * C * f_bytes + S * hw * 4 + Np * C * 4)),
    )(m, wcls, f)
    return protos[:n_way]


# ----------------------------------------------------------------------------
# GroupNorm + ReLU, channels-last, bf16 in/out, f32 statistics (var clamped >=0).
# One image per grid step; group stats via lane-dense one-hot reductions.
# ----------------------------------------------------------------------------
def _gn_relu_kernel(x_ref, at_ref, w_ref, b_ref, o_ref, *, eps, relu, cg):
    x = x_ref[0].astype(jnp.float32)                     # (HW, C)
    at = at_ref[...]                                     # (G, C) one-hot membership
    hw = x.shape[0]
    n = float(hw * cg)

    ch_sum = jnp.sum(x, axis=0, keepdims=True)           # (1, C)
    ch_sq = jnp.sum(x * x, axis=0, keepdims=True)        # (1, C)
    g_sum = jnp.sum(ch_sum * at, axis=1, keepdims=True)  # (G, 1)
    g_sq = jnp.sum(ch_sq * at, axis=1, keepdims=True)    # (G, 1)

    mean_g = g_sum / n
    var_g = jnp.maximum(g_sq / n - mean_g * mean_g, 0.0)  # clamp: no rsqrt(neg)
    inv_g = jax.lax.rsqrt(var_g + eps)

    mean_c = jnp.sum(mean_g * at, axis=0, keepdims=True)  # (1, C)
    inv_c = jnp.sum(inv_g * at, axis=0, keepdims=True)    # (1, C)

    y = (x - mean_c) * inv_c * w_ref[...] + b_ref[...]
    if relu:
        y = jnp.maximum(y, 0.0)
    o_ref[0] = y.astype(o_ref.dtype)


def groupnorm_relu_nhwc(x, weight, bias, num_groups, eps=1e-5, relu=True):
    """x: (B, H, W, C) channels-last (bf16 or f32) -> same shape/dtype."""
    B, H, W, C = x.shape
    G = num_groups
    Cg = C // G
    HW = H * W
    xr = x.reshape(B, HW, C)
    at = (jnp.arange(C)[None, :] // Cg == jnp.arange(G)[:, None]).astype(jnp.float32)
    w2 = weight.reshape(1, C).astype(jnp.float32)
    b2 = bias.reshape(1, C).astype(jnp.float32)
    x_bytes = int(x.dtype.itemsize)

    out = pl.pallas_call(
        functools.partial(_gn_relu_kernel, eps=eps, relu=relu, cg=Cg),
        out_shape=jax.ShapeDtypeStruct((B, HW, C), x.dtype),
        grid=(B,),
        in_specs=[pl.BlockSpec((1, HW, C), lambda b: (b, 0, 0)),
                  pl.BlockSpec((G, C), lambda b: (0, 0)),
                  pl.BlockSpec((1, C), lambda b: (0, 0)),
                  pl.BlockSpec((1, C), lambda b: (0, 0))],
        out_specs=pl.BlockSpec((1, HW, C), lambda b: (b, 0, 0)),
        compiler_params=pltpu.CompilerParams(
            dimension_semantics=("parallel",),
            vmem_limit_bytes=_vmem_limit()),
        cost_estimate=pl.CostEstimate(
            flops=int(10 * B * HW * C),
            transcendentals=int(B * G),
            bytes_accessed=int(2 * B * HW * C * x_bytes)),
    )(xr, at, w2, b2)
    return out.reshape(B, H, W, C)


# ----------------------------------------------------------------------------
# Fused ConvTranspose2d(k=4, s=2, p=1, bias=False), channels-last.
# Sub-pixel decomposition: out[2i+r, 2j+c] = sum_{di,dj} x[i-1+r+di, j-1+c+dj] @
# w[:, :, 3-r-2*di, 3-c-2*dj].  Grid = (image, input row); each step DMAs three
# halo rows + the packed taps, runs 16 small MXU matmuls from VMEM, and stores
# the four (W, Cout) sub-pixel planes of output rows 2i, 2i+1 directly.
# ----------------------------------------------------------------------------
def _deconv_kernel(x0_ref, x1_ref, x2_ref, w_ref, o_ref):
    W = o_ref.shape[4]
    rows = (x0_ref[0, 0], x1_ref[0, 0], x2_ref[0, 0])     # (W+2, Cin) each, bf16
    for r in range(2):
        for c in range(2):
            acc = None
            for di in range(2):
                src = rows[r + di]
                for dj in range(2):
                    k = ((r * 2 + c) * 2 + di) * 2 + dj
                    d = jnp.dot(src[c + dj:c + dj + W, :], w_ref[k],
                                preferred_element_type=jnp.float32)
                    acc = d if acc is None else acc + d
            o_ref[0, 0, r, c] = acc.astype(o_ref.dtype)


def _pack_deconv_weight(w_t):
    """w_t: (Cin, Cout, 4, 4) torch ConvTranspose2d weight -> (16, Cin, Cout) bf16."""
    subs = []
    for r in range(2):
        for c in range(2):
            for di in range(2):
                for dj in range(2):
                    subs.append(w_t[:, :, 3 - r - 2 * di, 3 - c - 2 * dj])
    return jnp.stack(subs, axis=0).astype(jnp.bfloat16)


def conv_transpose_4s2p1_nhwc(x, w_t, *, out_dtype=jnp.bfloat16, to_nchw=False):
    """x: (B, H, W, Cin) NHWC; w_t: (Cin, Cout, 4, 4).  Returns (B, 2H, 2W, Cout)
    NHWC (out_dtype), or (B, Cout, 2H, 2W) if to_nchw (final stage, no extra pass)."""
    B, H, W, Cin = x.shape
    Cout = w_t.shape[1]
    xp = jnp.pad(x.astype(jnp.bfloat16), ((0, 0), (1, 1), (1, 1), (0, 0)))
    wpack = _pack_deconv_weight(w_t)                          # (16, Cin, Cout)
    o_bytes = int(jnp.dtype(out_dtype).itemsize)

    out = pl.pallas_call(
        _deconv_kernel,
        out_shape=jax.ShapeDtypeStruct((B, H, 2, 2, W, Cout), out_dtype),
        grid=(B, H),
        in_specs=[
            pl.BlockSpec((1, 1, W + 2, Cin), lambda b, i: (b, i, 0, 0)),
            pl.BlockSpec((1, 1, W + 2, Cin), lambda b, i: (b, i + 1, 0, 0)),
            pl.BlockSpec((1, 1, W + 2, Cin), lambda b, i: (b, i + 2, 0, 0)),
            pl.BlockSpec((16, Cin, Cout), lambda b, i: (0, 0, 0)),
        ],
        out_specs=pl.BlockSpec((1, 1, 2, 2, W, Cout),
                               lambda b, i: (b, i, 0, 0, 0, 0)),
        compiler_params=pltpu.CompilerParams(
            dimension_semantics=("parallel", "parallel"),
            vmem_limit_bytes=_vmem_limit()),
        cost_estimate=pl.CostEstimate(
            flops=int(32 * B * H * W * Cin * Cout),
            transcendentals=0,
            bytes_accessed=int(3 * B * H * (W + 2) * Cin * 2
                               + 16 * Cin * Cout * 2
                               + 4 * B * H * W * Cout * o_bytes)),
    )(xp, xp, xp, wpack)

    if to_nchw:
        # (B,H,r,c,W,C) -> (B,C,H,r,W,c) -> (B,C,2H,2W): interleave + NCHW in one pass.
        return out.transpose(0, 5, 1, 2, 4, 3).reshape(B, Cout, 2 * H, 2 * W)
    # (B,H,r,c,W,C) -> (B,H,r,W,c,C) -> (B,2H,2W,C)
    return out.transpose(0, 1, 2, 4, 3, 5).reshape(B, 2 * H, 2 * W, Cout)


# ----------------------------------------------------------------------------
# Encoder stand-in: /8 patch embedding -> channels-last bf16 features (B,h,w,C).
# ----------------------------------------------------------------------------
def encode(imgs, w_embed):
    # TODO(synk): real ResNet50 backbone not ported; /8 patch-embedding stand-in.
    B, Cin, H, W = imgs.shape
    p = 8
    h, w = H // p, W // p
    x = imgs.reshape(B, Cin, h, p, w, p).transpose(0, 2, 4, 1, 3, 5)
    x = x.reshape(B * h * w, Cin * p * p)
    feat = pallas_matmul(x, w_embed, out_dtype=jnp.bfloat16)   # bf16 intermediates
    return feat.reshape(B, h, w, -1), h, w


# ----------------------------------------------------------------------------
# Similarity: einsum('bchw,nc->bnhw') computed channels-last as (B*h*w, C) @ C^T.
# N = n_way+1 stays unpadded (no 128-lane junk stores); f32 compute to keep the
# similarity/prototype path in higher precision.
# ----------------------------------------------------------------------------
def similarity_nhwc(q_feat_nhwc, protos):
    B, h, w, C = q_feat_nhwc.shape
    N = protos.shape[0]
    q = q_feat_nhwc.reshape(B * h * w, C)
    sim = pallas_matmul(q, protos.T, out_dtype=jnp.float32, cast_bf16=False)
    return sim.reshape(B, h, w, N)


# ----------------------------------------------------------------------------
# ProtoNet forward
# ----------------------------------------------------------------------------
def protonet_forward(params, s_imgs, s_masks, s_labels, q_imgs, selected_classes):
    s_feat, h, w = encode(s_imgs, params["w_embed"])     # (S, h, w, C) NHWC bf16
    q_feat, _, _ = encode(q_imgs, params["w_embed"])     # (B, h, w, C) NHWC bf16

    fg_proto = compute_prototypes(s_feat, s_masks, s_labels, selected_classes)
    all_proto = jnp.concatenate([fg_proto, params["gl_bg_proto"]], axis=0)

    sim = similarity_nhwc(q_feat, all_proto)             # (B, h, w, n_way+1) f32

    x = conv_transpose_4s2p1_nhwc(sim, params["dec_w1"], out_dtype=jnp.bfloat16)
    x = groupnorm_relu_nhwc(x, params["gn1_w"], params["gn1_b"], num_groups=4)
    x = conv_transpose_4s2p1_nhwc(x, params["dec_w2"], out_dtype=jnp.bfloat16)
    x = groupnorm_relu_nhwc(x, params["gn2_w"], params["gn2_b"], num_groups=2)
    logits = conv_transpose_4s2p1_nhwc(x, params["dec_w3"], out_dtype=jnp.float32,
                                       to_nchw=True)     # (B, n_way+1, H, W)
    return logits


def init_params(key, n_way, feat_dim):
    ks = jax.random.split(key, 6)
    cin = n_way + 1
    return {
        "w_embed": 0.02 * jax.random.normal(ks[0], (3 * 8 * 8, feat_dim), jnp.float32),
        "gl_bg_proto": 0.02 * jax.random.normal(ks[1], (1, feat_dim), jnp.float32),
        "dec_w1": 0.05 * jax.random.normal(ks[2], (cin, 64, 4, 4), jnp.float32),
        "dec_w2": 0.05 * jax.random.normal(ks[3], (64, 32, 4, 4), jnp.float32),
        "dec_w3": 0.05 * jax.random.normal(ks[4], (32, cin, 4, 4), jnp.float32),
        "gn1_w": jnp.ones((64,), jnp.float32),
        "gn1_b": jnp.zeros((64,), jnp.float32),
        "gn2_w": jnp.ones((32,), jnp.float32),
        "gn2_b": jnp.zeros((32,), jnp.float32),
    }


if __name__ == "__main__":
    key = jax.random.PRNGKey(0)
    n_way, k_shot = 3, 2
    B_q = 2
    H = W = 32
    feat_dim = 256                      # stand-in for ResNet50's 2048
    S = n_way * k_shot

    ks = jax.random.split(key, 5)
    s_imgs = jax.random.normal(ks[0], (S, 3, H, W), jnp.float32)
    s_masks = jnp.where(jax.random.normal(ks[1], (S, H, W)) > 0.0, 255.0, 0.0)
    s_labels = jnp.array([0, 0, 1, 1, 2, 2], jnp.int32)
    q_imgs = jax.random.normal(ks[2], (B_q, 3, H, W), jnp.float32)
    selected_classes = [0, 1, 2]

    params = init_params(ks[3], n_way, feat_dim)

    logits = protonet_forward(params, s_imgs, s_masks, s_labels, q_imgs,
                              selected_classes)
    logits = jax.block_until_ready(logits)
    assert logits.shape == (B_q, n_way + 1, H, W), logits.shape
    assert bool(jnp.all(jnp.isfinite(logits)))
    print("KERNEL_OK")
</pallas_src>

<mosaic_0001>
module attributes {stable_mosaic.version = 11 : i64} {
  func.func @_matmul_kernel(%arg0: i32, %arg1: i32, %arg2: i32, %arg3: memref<96x256xf32, #tpu.memory_space<vmem>>, %arg4: memref<256x256xf32, #tpu.memory_space<vmem>>, %arg5: memref<96x256xbf16, #tpu.memory_space<vmem>>, %arg6: memref<96x256xf32, #tpu.memory_space<vmem>>) attributes {dimension_semantics = [#tpu.dimension_semantics<parallel>, #tpu.dimension_semantics<parallel>, #tpu.dimension_semantics<arbitrary>], iteration_bounds = array<i64: 1, 1, 1>, scalar_prefetch = 0 : i64, scratch_operands = 1 : i64, tpu.core_type = #tpu.core_type<tc>, window_params = [{transform_indices = @transform_0, window_bounds = array<i64: 96, 256>}, {transform_indices = @transform_1, window_bounds = array<i64: 256, 256>}, {transform_indices = @transform_2, window_bounds = array<i64: 96, 256>}]} {
    %c0_i32 = arith.constant 0 : i32
    %0 = arith.cmpi eq, %arg2, %c0_i32 : i32
    %1 = arith.extui %0 : i1 to i32
    %c0_i32_0 = arith.constant 0 : i32
    %2 = arith.cmpi ne, %1, %c0_i32_0 : i32
    scf.if %2 {
      %cst_10 = arith.constant 0.000000e+00 : f32
      %14 = vector.broadcast %cst_10 : f32 to vector<96x256xf32>
      %c0_11 = arith.constant 0 : index
      %c0_12 = arith.constant 0 : index
      %15 = vector.load %arg6[%c0_11, %c0_12] : memref<96x256xf32, #tpu.memory_space<vmem>>, vector<96x256xf32>
      tpu.vector_store %arg6[%c0_11, %c0_12], %14 {strides = array<i32>} : memref<96x256xf32, #tpu.memory_space<vmem>>, vector<96x256xf32>,
    } else {
    }
    %c0 = arith.constant 0 : index
    %c0_1 = arith.constant 0 : index
    %3 = vector.load %arg6[%c0, %c0_1] : memref<96x256xf32, #tpu.memory_space<vmem>>, vector<96x256xf32>
    %c0_2 = arith.constant 0 : index
    %c0_3 = arith.constant 0 : index
    %4 = vector.load %arg3[%c0_2, %c0_3] : memref<96x256xf32, #tpu.memory_space<vmem>>, vector<96x256xf32>
    %5 = arith.truncf %4 : vector<96x256xf32> to vector<96x256xbf16>
    %c0_4 = arith.constant 0 : index
    %c0_5 = arith.constant 0 : index
    %6 = vector.load %arg4[%c0_4, %c0_5] : memref<256x256xf32, #tpu.memory_space<vmem>>, vector<256x256xf32>
    %7 = arith.truncf %6 : vector<256x256xf32> to vector<256x256xbf16>
    %cst = arith.constant dense<0.000000e+00> : vector<96x256xf32>
    %8 = tpu.matmul %5, %7, %cst {dimension_numbers = #tpu.dot_dimension_numbers<[1], [0], [0], [1], [0, 0, 1, 1], [], []>} : vector<96x256xbf16>, vector<256x256xbf16>, vector<96x256xf32> -> vector<96x256xf32>
    %9 = arith.addf %3, %8 : vector<96x256xf32>
    %c0_6 = arith.constant 0 : index
    %c0_7 = arith.constant 0 : index
    %10 = vector.load %arg6[%c0_6, %c0_7] : memref<96x256xf32, #tpu.memory_space<vmem>>, vector<96x256xf32>
    tpu.vector_store %arg6[%c0_6, %c0_7], %9 {strides = array<i32>} : memref<96x256xf32, #tpu.memory_space<vmem>>, vector<96x256xf32>,
    %c0_i32_8 = arith.constant 0 : i32
    %11 = arith.cmpi eq, %arg2, %c0_i32_8 : i32
    %12 = arith.extui %11 : i1 to i32
    %c0_i32_9 = arith.constant 0 : i32
    %13 = arith.cmpi ne, %12, %c0_i32_9 : i32
    scf.if %13 {
      %c0_10 = arith.constant 0 : index
      %c0_11 = arith.constant 0 : index
      %14 = vector.load %arg6[%c0_10, %c0_11] : memref<96x256xf32, #tpu.memory_space<vmem>>, vector<96x256xf32>
      %15 = arith.truncf %14 : vector<96x256xf32> to vector<96x256xbf16>
      %c0_12 = arith.constant 0 : index
      %c0_13 = arith.constant 0 : index
      %16 = vector.load %arg5[%c0_12, %c0_13] : memref<96x256xbf16, #tpu.memory_space<vmem>>, vector<96x256xbf16>
      tpu.vector_store %arg5[%c0_12, %c0_13], %15 {strides = array<i32>} : memref<96x256xbf16, #tpu.memory_space<vmem>>, vector<96x256xbf16>,
    } else {
    }
    return
  }
  func.func @transform_0(%arg0: i32, %arg1: i32, %arg2: i32) -> (i32, i32) {
    %c0_i32 = arith.constant 0 : i32
    return %arg0, %arg2 : i32, i32
  }
  func.func @transform_1(%arg0: i32, %arg1: i32, %arg2: i32) -> (i32, i32) {
    %c0_i32 = arith.constant 0 : i32
    return %arg2, %arg1 : i32, i32
  }
  func.func @transform_2(%arg0: i32, %arg1: i32, %arg2: i32) -> (i32, i32) {
    %c0_i32 = arith.constant 0 : i32
    return %arg0, %arg1 : i32, i32
  }
}

</mosaic_0001>

<llo_original>
// kernel: tpu_custom_call.1
$region0: #{tpu_custom_call.1}
  #allocation0 [shape = 'u32[]', space=smem, size = 0x4, offset = 0x4, fixed_abs, tag = 'smem constant byte address 0x4 - core index']
  #allocation1 [shape = 'u32[144,128]{1,0:T(1,128)}', space=vmem, size = 0x12000, scoped, tag = 'internal scratch']
  #allocation2 [shape = 'f32[96,256]{1,0:T(8,128)}', space=vmem, size = 0x18000, scoped, tag = 'scratch operand']
  %s0 = inlined_call_operand.hbm [shape: f32[96,256], index: 0, kind: input, shape index: {}]
  %s1 = inlined_call_operand.hbm [shape: f32[256,256], index: 1, kind: input, shape index: {}]
  %s2 = inlined_call_operand.hbm [shape: bf16[96,256], index: 2, kind: output, shape index: {}]
  %s3 = sld [smem:[#allocation0]]
  $region34: #{tpu_custom_call.1} parent=0
    _
  %s5 = ssub.s32 1, %s3
  %s6 = scalar_select 0, %s5, %s3
  $region1: #{tpu_custom_call.1} parent=0
    #allocation3 [shape = 'u8[98304]{0}', space=vmem, size = 0x18000, scoped, tag = 'input window, operand 0, single buffered']
    #allocation4 [shape = 's32[1]{0}', space=sflag, size = 0x4, scoped, tag = 'scoped memory for tpu_custom_call.1']
    #allocation5 [shape = 's32[1]{0}', space=sflag, size = 0x4, scoped, tag = 'scoped memory for tpu_custom_call.1']
    #allocation6 [shape = 'u8[262144]{0}', space=vmem, size = 0x40000, scoped, tag = 'input window, operand 1, single buffered']
    #allocation7 [shape = 's32[1]{0}', space=sflag, size = 0x4, scoped, tag = 'scoped memory for tpu_custom_call.1']
    #allocation8 [shape = 'u8[49152]{0}', space=vmem, size = 0xc000, scoped, tag = 'output window, operand 0, single buffered']
    %7 = vsyncpa [#allocation4], 0
    %8 = vsyncpa [#allocation7], 0
    %9 = vsyncpa [#allocation5], 0
    // Predicated region
    $region2: #{tpu_custom_call.1} parent=1 // pred_check
      _
    $region3: #{tpu_custom_call.1} parent=1 // pred_check_branch
      %11 = sbr.rel (0) target = $region5
    $region4: #{tpu_custom_call.1} parent=1 // pred_region
      %s13 = ssub.s32 3072, 3072
      %14 = vsyncadd [#allocation4], %s13
      %s15 = sshll.u32 [#allocation3], 4
      %s16 = int_to_ptr.vmem [resolvable:$true] %s15
      %21 = dma.hbm_to_vmem [thread:$0]  %s0, 3072, %s16, [#allocation4], 256, 256, 16
    $region5: #{tpu_custom_call.1} parent=1 // pred_fallthru
      _
    // Predicated region
    $region6: #{tpu_custom_call.1} parent=1 // pred_check
      _
    $region7: #{tpu_custom_call.1} parent=1 // pred_check_branch
      %23 = sbr.rel (0) target = $region9
    $region8: #{tpu_custom_call.1} parent=1 // pred_region
      %s25 = ssub.s32 8192, 8192
      %26 = vsyncadd [#allocation7], %s25
      %s27 = sshll.u32 [#allocation6], 4
      %s28 = int_to_ptr.vmem [resolvable:$true] %s27
      %33 = dma.hbm_to_vmem [thread:$0]  %s1, 8192, %s28, [#allocation7], 256, 256, 16
    $region9: #{tpu_custom_call.1} parent=1 // pred_fallthru
      _
    // Predicated region
    $region10: #{tpu_custom_call.1} parent=1 // pred_check
      _
    $region11: #{tpu_custom_call.1} parent=1 // pred_check_branch
      %35 = sbr.rel (0) target = $region13
    $region12: #{tpu_custom_call.1} parent=1 // pred_region
      %36 = dma.done [#allocation4], 3072
    $region13: #{tpu_custom_call.1} parent=1 // pred_fallthru
      _
    // Predicated region
    $region14: #{tpu_custom_call.1} parent=1 // pred_check
      _
    $region15: #{tpu_custom_call.1} parent=1 // pred_check_branch
      %38 = sbr.rel (0) target = $region17
    $region16: #{tpu_custom_call.1} parent=1 // pred_region
      %39 = dma.done [#allocation7], 8192
    $region17: #{tpu_custom_call.1} parent=1 // pred_fallthru
      _
    %p40 = scmp.eq.s32.totalorder 0, 0
    // Predicated region
    $region18: #{tpu_custom_call.1} parent=1 // pred_check
      %p41 = pneg %p40
    $region19: #{tpu_custom_call.1} parent=1 // pred_check_branch
      %43 = sbr.rel (%p41) target = $region21
    $region20: #{tpu_custom_call.1} parent=1 // pred_region
      %44 = vst [vmem:[#allocation2] sm:$0xff] 0.0
      %45 = vst [vmem:[#allocation2 + $0x8] sm:$0xff] 0.0
      %46 = vst [vmem:[#allocation2 + $0x10] sm:$0xff] 0.0
      %47 = vst [vmem:[#allocation2 + $0x18] sm:$0xff] 0.0
      %48 = vst [vmem:[#allocation2 + $0x20] sm:$0xff] 0.0
      %49 = vst [vmem:[#allocation2 + $0x28] sm:$0xff] 0.0
      %50 = vst [vmem:[#allocation2 + $0x30] sm:$0xff] 0.0
      %51 = vst [vmem:[#allocation2 + $0x38] sm:$0xff] 0.0
      %52 = vst [vmem:[#allocation2 + $0x40] sm:$0xff] 0.0
      %53 = vst [vmem:[#allocation2 + $0x48] sm:$0xff] 0.0
      %54 = vst [vmem:[#allocation2 + $0x50] sm:$0xff] 0.0
      %55 = vst [vmem:[#allocation2 + $0x58] sm:$0xff] 0.0
      %56 = vst [vmem:[#allocation2 + $0x60] sm:$0xff] 0.0
      %57 = vst [vmem:[#allocation2 + $0x68] sm:$0xff] 0.0
      %58 = vst [vmem:[#allocation2 + $0x70] sm:$0xff] 0.0
      %59 = vst [vmem:[#allocation2 + $0x78] sm:$0xff] 0.0
      %60 = vst [vmem:[#allocation2 + $0x80] sm:$0xff] 0.0
      %61 = vst [vmem:[#allocation2 + $0x88] sm:$0xff] 0.0
      %62 = vst [vmem:[#allocation2 + $0x90] sm:$0xff] 0.0
      %63 = vst [vmem:[#allocation2 + $0x98] sm:$0xff] 0.0
      %64 = vst [vmem:[#allocation2 + $0xa0] sm:$0xff] 0.0
      %65 = vst [vmem:[#allocation2 + $0xa8] sm:$0xff] 0.0
      %66 = vst [vmem:[#allocation2 + $0xb0] sm:$0xff] 0.0
      %67 = vst [vmem:[#allocation2 + $0xb8] sm:$0xff] 0.0
    $region21: #{tpu_custom_call.1} parent=1 // pred_fallthru
      _
    %v68 = vld [vmem:[#allocation2] sm:$0xff]
    %v69 = vld [vmem:[#allocation2 + $0x8] sm:$0xff]
    %v70 = vld [vmem:[#allocation2 + $0x10] sm:$0xff]
    %v71 = vld [vmem:[#allocation2 + $0x18] sm:$0xff]
    %v72 = vld [vmem:[#allocation2 + $0x20] sm:$0xff]
    %v73 = vld [vmem:[#allocation2 + $0x28] sm:$0xff]
    %v74 = vld [vmem:[#allocation2 + $0x30] sm:$0xff]
    %v75 = vld [vmem:[#allocation2 + $0x38] sm:$0xff]
    %v76 = vld [vmem:[#allocation2 + $0x40] sm:$0xff]
    %v77 = vld [vmem:[#allocation2 + $0x48] sm:$0xff]
    %v78 = vld [vmem:[#allocation2 + $0x50] sm:$0xff]
    %v79 = vld [vmem:[#allocation2 + $0x58] sm:$0xff]
    %v80 = vld [vmem:[#allocation2 + $0x60] sm:$0xff]
    %v81 = vld [vmem:[#allocation2 + $0x68] sm:$0xff]
    %v82 = vld [vmem:[#allocation2 + $0x70] sm:$0xff]
    %v83 = vld [vmem:[#allocation2 + $0x78] sm:$0xff]
    %v84 = vld [vmem:[#allocation2 + $0x80] sm:$0xff]
    %v85 = vld [vmem:[#allocation2 + $0x88] sm:$0xff]
    %v86 = vld [vmem:[#allocation2 + $0x90] sm:$0xff]
    %v87 = vld [vmem:[#allocation2 + $0x98] sm:$0xff]
    %v88 = vld [vmem:[#allocation2 + $0xa0] sm:$0xff]
    %v89 = vld [vmem:[#allocation2 + $0xa8] sm:$0xff]
    %v90 = vld [vmem:[#allocation2 + $0xb0] sm:$0xff]
    %v91 = vld [vmem:[#allocation2 + $0xb8] sm:$0xff]
    %v92 = vld [vmem:[#allocation3] sm:$0xff]
    %v93 = vld [vmem:[#allocation3 + $0x8] sm:$0xff]
    %v94 = vld [vmem:[#allocation3 + $0x10] sm:$0xff]
    %v95 = vld [vmem:[#allocation3 + $0x18] sm:$0xff]
    %v96 = vld [vmem:[#allocation3 + $0x20] sm:$0xff]
    %v97 = vld [vmem:[#allocation3 + $0x28] sm:$0xff]
    %v98 = vld [vmem:[#allocation3 + $0x30] sm:$0xff]
    %v99 = vld [vmem:[#allocation3 + $0x38] sm:$0xff]
    %v100 = vld [vmem:[#allocation3 + $0x40] sm:$0xff]
    %v101 = vld [vmem:[#allocation3 + $0x48] sm:$0xff]
    %v102 = vld [vmem:[#allocation3 + $0x50] sm:$0xff]
    %v103 = vld [vmem:[#allocation3 + $0x58] sm:$0xff]
    %v104 = vld [vmem:[#allocation3 + $0x60] sm:$0xff]
    %v105 = vld [vmem:[#allocation3 + $0x68] sm:$0xff]
    %v106 = vld [vmem:[#allocation3 + $0x70] sm:$0xff]
    %v107 = vld [vmem:[#allocation3 + $0x78] sm:$0xff]
    %v108 = vld [vmem:[#allocation3 + $0x80] sm:$0xff]
    %v109 = vld [vmem:[#allocation3 + $0x88] sm:$0xff]
    %v110 = vld [vmem:[#allocation3 + $0x90] sm:$0xff]
    %v111 = vld [vmem:[#allocation3 + $0x98] sm:$0xff]
    %v112 = vld [vmem:[#allocation3 + $0xa0] sm:$0xff]
    %v113 = vld [vmem:[#allocation3 + $0xa8] sm:$0xff]
    %v114 = vld [vmem:[#allocation3 + $0xb0] sm:$0xff]
    %v115 = vld [vmem:[#allocation3 + $0xb8] sm:$0xff]
    %v116 = vpack.c.bf16 %v94, %v92
    %v117 = vpack.c.bf16 %v95, %v93
    %v118 = vpack.c.bf16 %v98, %v96
    %v119 = vpack.c.bf16 %v99, %v97
    %v120 = vpack.c.bf16 %v102, %v100
    %v121 = vpack.c.bf16 %v103, %v101
    %v122 = vpack.c.bf16 %v106, %v104
    %v123 = vpack.c.bf16 %v107, %v105
    %v124 = vpack.c.bf16 %v110, %v108
    %v125 = vpack.c.bf16 %v111, %v109
    %v126 = vpack.c.bf16 %v114, %v112
    %v127 = vpack.c.bf16 %v115, %v113
    %v128 = vld [vmem:[#allocation6] sm:$0xff]
    %v129 = vld [vmem:[#allocation6 + $0x8] sm:$0xff]
    %v130 = vld [vmem:[#allocation6 + $0x10] sm:$0xff]
    %v131 = vld [vmem:[#allocation6 + $0x18] sm:$0xff]
    %v132 = vld [vmem:[#allocation6 + $0x20] sm:$0xff]
    %v133 = vld [vmem:[#allocation6 + $0x28] sm:$0xff]
    %v134 = vld [vmem:[#allocation6 + $0x30] sm:$0xff]
    %v135 = vld [vmem:[#allocation6 + $0x38] sm:$0xff]
    %v136 = vld [vmem:[#allocation6 + $0x40] sm:$0xff]
    %v137 = vld [vmem:[#allocation6 + $0x48] sm:$0xff]
    %v138 = vld [vmem:[#allocation6 + $0x50] sm:$0xff]
    %v139 = vld [vmem:[#allocation6 + $0x58] sm:$0xff]
    %v140 = vld [vmem:[#allocation6 + $0x60] sm:$0xff]
    %v141 = vld [vmem:[#allocation6 + $0x68] sm:$0xff]
    %v142 = vld [vmem:[#allocation6 + $0x70] sm:$0xff]
    %v143 = vld [vmem:[#allocation6 + $0x78] sm:$0xff]
    %v144 = vld [vmem:[#allocation6 + $0x80] sm:$0xff]
    %v145 = vld [vmem:[#allocation6 + $0x88] sm:$0xff]
    %v146 = vld [vmem:[#allocation6 + $0x90] sm:$0xff]
    %v147 = vld [vmem:[#allocation6 + $0x98] sm:$0xff]
    %v148 = vld [vmem:[#allocation6 + $0xa0] sm:$0xff]
    %v149 = vld [vmem:[#allocation6 + $0xa8] sm:$0xff]
    %v150 = vld [vmem:[#allocation6 + $0xb0] sm:$0xff]
    %v151 = vld [vmem:[#allocation6 + $0xb8] sm:$0xff]
    %v152 = vld [vmem:[#allocation6 + $0xc0] sm:$0xff]
    %v153 = vld [vmem:[#allocation6 + $0xc8] sm:$0xff]
    %v154 = vld [vmem:[#allocation6 + $0xd0] sm:$0xff]
    %v155 = vld [vmem:[#allocation6 + $0xd8] sm:$0xff]
    %v156 = vld [vmem:[#allocation6 + $0xe0] sm:$0xff]
    %v157 = vld [vmem:[#allocation6 + $0xe8] sm:$0xff]
    %v158 = vld [vmem:[#allocation6 + $0xf0] sm:$0xff]
    %v159 = vld [vmem:[#allocation6 + $0xf8] sm:$0xff]
    %v160 = vld [vmem:[#allocation6 + $0x100] sm:$0xff]
    %v161 = vld [vmem:[#allocation6 + $0x108] sm:$0xff]
    %v162 = vld [vmem:[#allocation6 + $0x110] sm:$0xff]
    %v163 = vld [vmem:[#allocation6 + $0x118] sm:$0xff]
    %v164 = vld [vmem:[#allocation6 + $0x120] sm:$0xff]
    %v165 = vld [vmem:[#allocation6 + $0x128] sm:$0xff]
    %v166 = vld [vmem:[#allocation6 + $0x130] sm:$0xff]
    %v167 = vld [vmem:[#allocation6 + $0x138] sm:$0xff]
    %v168 = vld [vmem:[#allocation6 + $0x140] sm:$0xff]
    %v169 = vld [vmem:[#allocation6 + $0x148] sm:$0xff]
    %v170 = vld [vmem:[#allocation6 + $0x150] sm:$0xff]
    %v171 = vld [vmem:[#allocation6 + $0x158] sm:$0xff]
    %v172 = vld [vmem:[#allocation6 + $0x160] sm:$0xff]
    %v173 = vld [vmem:[#allocation6 + $0x168] sm:$0xff]
    %v174 = vld [vmem:[#allocation6 + $0x170] sm:$0xff]
    %v175 = vld [vmem:[#allocation6 + $0x178] sm:$0xff]
    %v176 = vld [vmem:[#allocation6 + $0x180] sm:$0xff]
    %v177 = vld [vmem:[#allocation6 + $0x188] sm:$0xff]
    %v178 = vld [vmem:[#allocation6 + $0x190] sm:$0xff]
    %v179 = vld [vmem:[#allocation6 + $0x198] sm:$0xff]
    %v180 = vld [vmem:[#allocation6 + $0x1a0] sm:$0xff]
    %v181 = vld [vmem:[#allocation6 + $0x1a8] sm:$0xff]
    %v182 = vld [vmem:[#allocation6 + $0x1b0] sm:$0xff]
    %v183 = vld [vmem:[#allocation6 + $0x1b8] sm:$0xff]
    %v184 = vld [vmem:[#allocation6 + $0x1c0] sm:$0xff]
    %v185 = vld [vmem:[#allocation6 + $0x1c8] sm:$0xff]
    %v186 = vld [vmem:[#allocation6 + $0x1d0] sm:$0xff]
    %v187 = vld [vmem:[#allocation6 + $0x1d8] sm:$0xff]
    %v188 = vld [vmem:[#allocation6 + $0x1e0] sm:$0xff]
    %v189 = vld [vmem:[#allocation6 + $0x1e8] sm:$0xff]
    %v190 = vld [vmem:[#allocation6 + $0x1f0] sm:$0xff]
    %v191 = vld [vmem:[#allocation6 + $0x1f8] sm:$0xff]
    %v192 = vpack.c.bf16 %v130, %v128
    %v193 = vpack.c.bf16 %v131, %v129
    %v194 = vpack.c.bf16 %v134, %v132
    %v195 = vpack.c.bf16 %v135, %v133
    %v196 = vpack.c.bf16 %v138, %v136
    %v197 = vpack.c.bf16 %v139, %v137
    %v198 = vpack.c.bf16 %v142, %v140
    %v199 = vpack.c.bf16 %v143, %v141
    %v200 = vpack.c.bf16 %v146, %v144
    %v201 = vpack.c.bf16 %v147, %v145
    %v202 = vpack.c.bf16 %v150, %v148
    %v203 = vpack.c.bf16 %v151, %v149
    %v204 = vpack.c.bf16 %v154, %v152
    %v205 = vpack.c.bf16 %v155, %v153
    %v206 = vpack.c.bf16 %v158, %v156
    %v207 = vpack.c.bf16 %v159, %v157
    %v208 = vpack.c.bf16 %v162, %v160
    %v209 = vpack.c.bf16 %v163, %v161
    %v210 = vpack.c.bf16 %v166, %v164
    %v211 = vpack.c.bf16 %v167, %v165
    %v212 = vpack.c.bf16 %v170, %v168
    %v213 = vpack.c.bf16 %v171, %v169
    %v214 = vpack.c.bf16 %v174, %v172
    %v215 = vpack.c.bf16 %v175, %v173
    %v216 = vpack.c.bf16 %v178, %v176
    %v217 = vpack.c.bf16 %v179, %v177
    %v218 = vpack.c.bf16 %v182, %v180
    %v219 = vpack.c.bf16 %v183, %v181
    %v220 = vpack.c.bf16 %v186, %v184
    %v221 = vpack.c.bf16 %v187, %v185
    %v222 = vpack.c.bf16 %v190, %v188
    %v223 = vpack.c.bf16 %v191, %v189
    %224 = vmatprep.subr.bf16.mxu0 %v207
    %225 = vmatpush1.bf16.msra.mxu0 %v206
    %226 = vmatprep.subr.bf16.mxu0 %v205
    %227 = vmatpush1.bf16.msra.mxu0 %v204
    %228 = vmatprep.subr.bf16.mxu0 %v203
    %229 = vmatpush1.bf16.msra.mxu0 %v202
    %230 = vmatprep.subr.bf16.mxu0 %v201
    %231 = vmatpush1.bf16.msra.mxu0 %v200
    %232 = vmatprep.subr.bf16.mxu0 %v199
    %233 = vmatpush1.bf16.msra.mxu0 %v198
    %234 = vmatprep.subr.bf16.mxu0 %v197
    %235 = vmatpush1.bf16.msra.mxu0 %v196
    %236 = vmatprep.subr.bf16.mxu0 %v195
    %237 = vmatpush1.bf16.msra.mxu0 %v194
    %238 = vmatprep.subr.bf16.mxu0 %v193
    %239 = vmatpush1.bf16.msra.mxu0 %v192
    %240 = vmatprep.subr.bf16.mxu0 %v223
    %241 = vmatpush2.bf16.msra.mxu0 %v222
    %242 = vmatprep.subr.bf16.mxu0 %v221
    %243 = vmatpush2.bf16.msra.mxu0 %v220
    %244 = vmatprep.subr.bf16.mxu0 %v219
    %245 = vmatpush2.bf16.msra.mxu0 %v218
    %246 = vmatprep.subr.bf16.mxu0 %v217
    %247 = vmatpush2.bf16.msra.mxu0 %v216
    %248 = vmatprep.subr.bf16.mxu0 %v215
    %249 = vmatpush2.bf16.msra.mxu0 %v214
    %250 = vmatprep.subr.bf16.mxu0 %v213
    %251 = vmatpush2.bf16.msra.mxu0 %v212
    %252 = vmatprep.subr.bf16.mxu0 %v211
    %253 = vmatpush2.bf16.msra.mxu0 %v210
    %254 = vmatprep.subr.bf16.mxu0 %v209
    %255 = vmatpush2.bf16.msra.mxu0 %v208
    %256 = vmatprep.mubr.bf16.mxu0 %v117
    %257 = vmatmul.mubr.bf16.gmra.mxu0 %v116
    %v258 = vpop.f32.mrf.mxu0
    %v259 = vadd.f32 0.0, %v258
    %v260 = vpop.f32.mrf.mxu0
    %v261 = vadd.f32 0.0, %v260
    %v262 = vpop.f32.mrf.mxu0
    %v263 = vadd.f32 0.0, %v262
    %v264 = vpop.f32.mrf.mxu0
    %v265 = vadd.f32 0.0, %v264
    %266 = vmatprep.mubr.bf16.mxu0 %v119
    %267 = vmatmul.mubr.bf16.gmra.mxu0 %v118
    %v268 = vpop.f32.mrf.mxu0
    %v269 = vadd.f32 0.0, %v268
    %v270 = vpop.f32.mrf.mxu0
    %v271 = vadd.f32 0.0, %v270
    %v272 = vpop.f32.mrf.mxu0
    %v273 = vadd.f32 0.0, %v272
    %v274 = vpop.f32.mrf.mxu0
    %v275 = vadd.f32 0.0, %v274
    %276 = vmatprep.mubr.bf16.mxu0 %v121
    %277 = vmatmul.mubr.bf16.gmra.mxu0 %v120
    %v278 = vpop.f32.mrf.mxu0
    %v279 = vadd.f32 0.0, %v278
    %v280 = vpop.f32.mrf.mxu0
    %v281 = vadd.f32 0.0, %v280
    %v282 = vpop.f32.mrf.mxu0
    %v283 = vadd.f32 0.0, %v282
    %v284 = vpop.f32.mrf.mxu0
    %v285 = vadd.f32 0.0, %v284
    %286 = vmatprep.mubr.bf16.mxu0 %v123
    %287 = vmatmul.mubr.bf16.gmra.mxu0 %v122
    %v288 = vpop.f32.mrf.mxu0
    %v289 = vadd.f32 0.0, %v288
    %v290 = vpop.f32.mrf.mxu0
    %v291 = vadd.f32 0.0, %v290
    %v292 = vpop.f32.mrf.mxu0
    %v293 = vadd.f32 0.0, %v292
    %v294 = vpop.f32.mrf.mxu0
    %v295 = vadd.f32 0.0, %v294
    %296 = vmatprep.mubr.bf16.mxu0 %v125
    %297 = vmatmul.mubr.bf16.gmra.mxu0 %v124
    %v298 = vpop.f32.mrf.mxu0
    %v299 = vadd.f32 0.0, %v298
    %v300 = vpop.f32.mrf.mxu0
    %v301 = vadd.f32 0.0, %v300
    %v302 = vpop.f32.mrf.mxu0
    %v303 = vadd.f32 0.0, %v302
    %v304 = vpop.f32.mrf.mxu0
    %v305 = vadd.f32 0.0, %v304
    %306 = vmatprep.mubr.bf16.mxu0 %v127
    %307 = vmatmul.mubr.bf16.gmra.mxu0 %v126
    %v308 = vpop.f32.mrf.mxu0
    %v309 = vadd.f32 0.0, %v308
    %v310 = vpop.f32.mrf.mxu0
    %v311 = vadd.f32 0.0, %v310
    %v312 = vpop.f32.mrf.mxu0
    %v313 = vadd.f32 0.0, %v312
    %v314 = vpop.f32.mrf.mxu0
    %v315 = vadd.f32 0.0, %v314
    %316 = vdwg.mxu0
    %v317 = vadd.f32 %v68, %v259
    %v318 = vadd.f32 %v69, %v261
    %v319 = vadd.f32 %v70, %v263
    %v320 = vadd.f32 %v71, %v265
    %v321 = vadd.f32 %v72, %v269
    %v322 = vadd.f32 %v73, %v271
    %v323 = vadd.f32 %v74, %v273
    %v324 = vadd.f32 %v75, %v275
    %v325 = vadd.f32 %v76, %v279
    %v326 = vadd.f32 %v77, %v281
    %v327 = vadd.f32 %v78, %v283
    %v328 = vadd.f32 %v79, %v285
    %v329 = vadd.f32 %v80, %v289
    %v330 = vadd.f32 %v81, %v291
    %v331 = vadd.f32 %v82, %v293
    %v332 = vadd.f32 %v83, %v295
    %v333 = vadd.f32 %v84, %v299
    %v334 = vadd.f32 %v85, %v301
    %v335 = vadd.f32 %v86, %v303
    %v336 = vadd.f32 %v87, %v305
    %v337 = vadd.f32 %v88, %v309
    %v338 = vadd.f32 %v89, %v311
    %v339 = vadd.f32 %v90, %v313
    %v340 = vadd.f32 %v91, %v315
    %341 = vst [vmem:[#allocation2] sm:$0xff] %v317
    %342 = vst [vmem:[#allocation2 + $0x8] sm:$0xff] %v318
    %343 = vst [vmem:[#allocation2 + $0x10] sm:$0xff] %v319
    %344 = vst [vmem:[#allocation2 + $0x18] sm:$0xff] %v320
    %345 = vst [vmem:[#allocation2 + $0x20] sm:$0xff] %v321
    %346 = vst [vmem:[#allocation2 + $0x28] sm:$0xff] %v322
    %347 = vst [vmem:[#allocation2 + $0x30] sm:$0xff] %v323
    %348 = vst [vmem:[#allocation2 + $0x38] sm:$0xff] %v324
    %349 = vst [vmem:[#allocation2 + $0x40] sm:$0xff] %v325
    %350 = vst [vmem:[#allocation2 + $0x48] sm:$0xff] %v326
    %351 = vst [vmem:[#allocation2 + $0x50] sm:$0xff] %v327
    %352 = vst [vmem:[#allocation2 + $0x58] sm:$0xff] %v328
    %353 = vst [vmem:[#allocation2 + $0x60] sm:$0xff] %v329
    %354 = vst [vmem:[#allocation2 + $0x68] sm:$0xff] %v330
    %355 = vst [vmem:[#allocation2 + $0x70] sm:$0xff] %v331
    %356 = vst [vmem:[#allocation2 + $0x78] sm:$0xff] %v332
    %357 = vst [vmem:[#allocation2 + $0x80] sm:$0xff] %v333
    %358 = vst [vmem:[#allocation2 + $0x88] sm:$0xff] %v334
    %359 = vst [vmem:[#allocation2 + $0x90] sm:$0xff] %v335
    %360 = vst [vmem:[#allocation2 + $0x98] sm:$0xff] %v336
    %361 = vst [vmem:[#allocation2 + $0xa0] sm:$0xff] %v337
    %362 = vst [vmem:[#allocation2 + $0xa8] sm:$0xff] %v338
    %363 = vst [vmem:[#allocation2 + $0xb0] sm:$0xff] %v339
    %364 = vst [vmem:[#allocation2 + $0xb8] sm:$0xff] %v340
    // Predicated region
    $region22: #{tpu_custom_call.1} parent=1 // pred_check
      %p365 = pneg %p40
    $region23: #{tpu_custom_call.1} parent=1 // pred_check_branch
      %367 = sbr.rel (%p365) target = $region25
    $region24: #{tpu_custom_call.1} parent=1 // pred_region
      %v368 = vld [vmem:[#allocation2] sm:$0xff]
      %v369 = vld [vmem:[#allocation2 + $0x8] sm:$0xff]
      %v370 = vld [vmem:[#allocation2 + $0x10] sm:$0xff]
      %v371 = vld [vmem:[#allocation2 + $0x18] sm:$0xff]
      %v372 = vld [vmem:[#allocation2 + $0x20] sm:$0xff]
      %v373 = vld [vmem:[#allocation2 + $0x28] sm:$0xff]
      %v374 = vld [vmem:[#allocation2 + $0x30] sm:$0xff]
      %v375 = vld [vmem:[#allocation2 + $0x38] sm:$0xff]
      %v376 = vld [vmem:[#allocation2 + $0x40] sm:$0xff]
      %v377 = vld [vmem:[#allocation2 + $0x48] sm:$0xff]
      %v378 = vld [vmem:[#allocation2 + $0x50] sm:$0xff]
      %v379 = vld [vmem:[#allocation2 + $0x58] sm:$0xff]
      %v380 = vld [vmem:[#allocation2 + $0x60] sm:$0xff]
      %v381 = vld [vmem:[#allocation2 + $0x68] sm:$0xff]
      %v382 = vld [vmem:[#allocation2 + $0x70] sm:$0xff]
      %v383 = vld [vmem:[#allocation2 + $0x78] sm:$0xff]
      %v384 = vld [vmem:[#allocation2 + $0x80] sm:$0xff]
      %v385 = vld [vmem:[#allocation2 + $0x88] sm:$0xff]
      %v386 = vld [vmem:[#allocation2 + $0x90] sm:$0xff]
      %v387 = vld [vmem:[#allocation2 + $0x98] sm:$0xff]
      %v388 = vld [vmem:[#allocation2 + $0xa0] sm:$0xff]
      %v389 = vld [vmem:[#allocation2 + $0xa8] sm:$0xff]
      %v390 = vld [vmem:[#allocation2 + $0xb0] sm:$0xff]
      %v391 = vld [vmem:[#allocation2 + $0xb8] sm:$0xff]
      %v392 = vpack.c.bf16 %v370, %v368
      %v393 = vpack.c.bf16 %v371, %v369
      %v394 = vpack.c.bf16 %v374, %v372
      %v395 = vpack.c.bf16 %v375, %v373
      %v396 = vpack.c.bf16 %v378, %v376
      %v397 = vpack.c.bf16 %v379, %v377
      %v398 = vpack.c.bf16 %v382, %v380
      %v399 = vpack.c.bf16 %v383, %v381
      %v400 = vpack.c.bf16 %v386, %v384
      %v401 = vpack.c.bf16 %v387, %v385
      %v402 = vpack.c.bf16 %v390, %v388
      %v403 = vpack.c.bf16 %v391, %v389
      %v416 = vunpack.c.l.b16 %v392
      %v417 = vunpack.c.l.b16 %v393
      %v418 = vunpack.c.h.b16 %v392
      %v419 = vunpack.c.h.b16 %v393
      %v420 = vunpack.c.l.b16 %v394
      %v421 = vunpack.c.l.b16 %v395
      %v422 = vunpack.c.h.b16 %v394
      %v423 = vunpack.c.h.b16 %v395
      %v424 = vunpack.c.l.b16 %v396
      %v425 = vunpack.c.l.b16 %v397
      %v426 = vunpack.c.h.b16 %v396
      %v427 = vunpack.c.h.b16 %v397
      %v428 = vunpack.c.l.b16 %v398
      %v429 = vunpack.c.l.b16 %v399
      %v430 = vunpack.c.h.b16 %v398
      %v431 = vunpack.c.h.b16 %v399
      %v432 = vunpack.c.l.b16 %v400
      %v433 = vunpack.c.l.b16 %v401
      %v434 = vunpack.c.h.b16 %v400
      %v435 = vunpack.c.h.b16 %v401
      %v436 = vunpack.c.l.b16 %v402
      %v437 = vunpack.c.l.b16 %v403
      %v438 = vunpack.c.h.b16 %v402
      %v439 = vunpack.c.h.b16 %v403
      %v440 = vpack.c.b16 %v417, %v416
      %v441 = vpack.c.b16 %v419, %v418
      %v442 = vpack.c.b16 %v421, %v420
      %v443 = vpack.c.b16 %v423, %v422
      %v444 = vpack.c.b16 %v425, %v424
      %v445 = vpack.c.b16 %v427, %v426
      %v446 = vpack.c.b16 %v429, %v428
      %v447 = vpack.c.b16 %v431, %v430
      %v448 = vpack.c.b16 %v433, %v432
      %v449 = vpack.c.b16 %v435, %v434
      %v450 = vpack.c.b16 %v437, %v436
      %v451 = vpack.c.b16 %v439, %v438
      %464 = vst [vmem:[#allocation8] sm:$0xff] %v440
      %465 = vst [vmem:[#allocation8 + $0x8] sm:$0xff] %v441
      %466 = vst [vmem:[#allocation8 + $0x10] sm:$0xff] %v442
      %467 = vst [vmem:[#allocation8 + $0x18] sm:$0xff] %v443
      %468 = vst [vmem:[#allocation8 + $0x20] sm:$0xff] %v444
      %469 = vst [vmem:[#allocation8 + $0x28] sm:$0xff] %v445
      %470 = vst [vmem:[#allocation8 + $0x30] sm:$0xff] %v446
      %471 = vst [vmem:[#allocation8 + $0x38] sm:$0xff] %v447
      %472 = vst [vmem:[#allocation8 + $0x40] sm:$0xff] %v448
      %473 = vst [vmem:[#allocation8 + $0x48] sm:$0xff] %v449
      %474 = vst [vmem:[#allocation8 + $0x50] sm:$0xff] %v450
      %475 = vst [vmem:[#allocation8 + $0x58] sm:$0xff] %v451
    $region25: #{tpu_custom_call.1} parent=1 // pred_fallthru
      _
    // Predicated region
    $region26: #{tpu_custom_call.1} parent=1 // pred_check
      _
    $region27: #{tpu_custom_call.1} parent=1 // pred_check_branch
      %477 = sbr.rel (0) target = $region29
    $region28: #{tpu_custom_call.1} parent=1 // pred_region
      %s479 = ssub.s32 1536, 1536
      %480 = vsyncadd [#allocation5], %s479
      %s481 = sshll.u32 [#allocation8], 4
      %s482 = int_to_ptr.vmem [resolvable:$true] %s481
      %487 = dma.vmem_to_hbm [thread:$0]  %s482, 1536, %s2, [#allocation5], 128, 128, 8
    $region29: #{tpu_custom_call.1} parent=1 // pred_fallthru
      _
    // Predicated region
    $region30: #{tpu_custom_call.1} parent=1 // pred_check
      _
    $region31: #{tpu_custom_call.1} parent=1 // pred_check_branch
      %489 = sbr.rel (0) target = $region33
    $region32: #{tpu_custom_call.1} parent=1 // pred_region
      %490 = dma.done [#allocation5], 1536
    $region33: #{tpu_custom_call.1} parent=1 // pred_fallthru
      _
    %491 = vsyncpa [#allocation4], 1
    %492 = vsyncpa [#allocation7], 1
    %493 = vsyncpa [#allocation5], 1

</llo_original>
